<compile_context>
chip_gen: v7x
topology: tpu7x:2x2x1
jax: 0.10.0
libtpu: 0.0.40
codegen_flags: <defaults>
</compile_context>

<pallas_src>
import functools

import jax
import jax.numpy as jnp
from jax.experimental import pallas as pl
from jax.experimental.pallas import tpu as pltpu


def _linear_kernel(x_ref, w_ref, b_ref, o_ref):
    # x_ref: (tm, msa_dim) VMEM tile
    # w_ref: (msa_dim, num_output) full weight (grid-invariant, stays resident)
    # b_ref: (1, num_output) f32 bias
    # o_ref: (tm, num_output) f32 output tile
    acc = jnp.dot(x_ref[...], w_ref[...], preferred_element_type=jnp.float32)
    o_ref[...] = (acc + b_ref[...]).astype(o_ref.dtype)


def _round_up(x, n):
    return ((x + n - 1) // n) * n


def _cdiv(a, b):
    return -(-a // b)


def _select_row_tile(m, msa_dim, num_output, x_itemsize, out_itemsize,
                     requested_tm):
    """Static (trace-time) row-tile selection.

    Keeps double-buffered x tile + double-buffered out tile under a
    conservative 12 MiB budget (safe for v5e's 16 MiB scoped-VMEM default,
    with headroom for the resident weight/bias), uses the biggest tile that
    fits, and keeps enough grid steps for v7x's two TensorCores when M is
    large.
    """
    budget_bytes = 12 * 1024 * 1024
    per_row_bytes = 2 * msa_dim * x_itemsize + 2 * num_output * out_itemsize
    vmem_rows = max(8, (budget_bytes // per_row_bytes) // 8 * 8)

    tm = max(8, min(requested_tm, vmem_rows))
    # Never exceed (8-aligned) M.
    tm = min(tm, _round_up(m, 8))
    # Keep >= ~8 grid steps when M is big enough (megacore + pipelining),
    # but never shrink a DMA below 512 rows.
    if _cdiv(m, tm) < 8 and tm > 512:
        tm = min(tm, max(512, _round_up(_cdiv(m, 8), 8)))
    return _round_up(tm, 8)


@functools.partial(jax.jit, static_argnames=("tm", "compute_dtype"))
def masked_msa_head_pallas(msa_act, weight, bias, *, tm=2048,
                           compute_dtype=None):
    """Pallas implementation of MaskedMsaHead.forward.

    msa_act:        [N_seq, N_res, msa_dim]
    weight:         [msa_dim, num_output]
    bias:           [num_output]
    tm:             requested row tile (auto-capped to fit VMEM)
    compute_dtype:  optional dtype (e.g. jnp.bfloat16) to cast msa_act/weight
                    to before the matmul; accumulation is always f32.
    returns: dict(logits=[N_seq, N_res, num_output]) in float32
    """
    n_seq, n_res, msa_dim = msa_act.shape
    num_output = weight.shape[1]
    m = n_seq * n_res

    if compute_dtype is not None:
        msa_act = msa_act.astype(compute_dtype)
        weight = weight.astype(compute_dtype)

    out_dtype = jnp.float32  # always emit f32 logits
    x_itemsize = jnp.dtype(msa_act.dtype).itemsize
    w_itemsize = jnp.dtype(weight.dtype).itemsize
    out_itemsize = jnp.dtype(out_dtype).itemsize

    tile_m = _select_row_tile(m, msa_dim, num_output, x_itemsize,
                              out_itemsize, tm)
    m_pad = _round_up(m, tile_m)
    grid_m = m_pad // tile_m

    x2d = msa_act.reshape(m, msa_dim)
    if m_pad != m:
        # Padded rows just compute `bias` and are sliced off below; this is
        # cheaper and simpler than a masked tail store for a streaming kernel.
        x2d = jnp.pad(x2d, ((0, m_pad - m), (0, 0)))
    b2d = bias.astype(jnp.float32).reshape(1, num_output)

    cost = pl.CostEstimate(
        flops=2 * m_pad * msa_dim * num_output,
        transcendentals=0,
        bytes_accessed=(m_pad * msa_dim * x_itemsize
                        + msa_dim * num_output * w_itemsize
                        + num_output * out_itemsize
                        + m_pad * num_output * out_itemsize),
    )

    logits2d = pl.pallas_call(
        _linear_kernel,
        out_shape=jax.ShapeDtypeStruct((m_pad, num_output), out_dtype),
        grid_spec=pltpu.PrefetchScalarGridSpec(
            num_scalar_prefetch=0,
            grid=(grid_m,),
            in_specs=[
                pl.BlockSpec((tile_m, msa_dim), lambda i: (i, 0)),
                pl.BlockSpec((msa_dim, num_output), lambda i: (0, 0)),
                pl.BlockSpec((1, num_output), lambda i: (0, 0)),
            ],
            out_specs=pl.BlockSpec((tile_m, num_output), lambda i: (i, 0)),
        ),
        compiler_params=pltpu.CompilerParams(
            dimension_semantics=("parallel",),
        ),
        cost_estimate=cost,
    )(x2d, weight, b2d)

    if m_pad != m:
        logits2d = logits2d[:m]
    return dict(logits=logits2d.reshape(n_seq, n_res, num_output))


def init_masked_msa_head_params(key, msa_dim, num_output, zero_init=True,
                                dtype=jnp.float32):
    """Parameter init mirroring Linear(msa_dim, num_output, ...).

    zero_init=True  -> 'zeros' initializer (module default; logits all zero).
    zero_init=False -> 'linear' (lecun-normal-like) initializer.
    """
    if zero_init:
        w = jnp.zeros((msa_dim, num_output), dtype)
    else:
        wkey, _ = jax.random.split(key)
        scale = 1.0 / jnp.sqrt(jnp.asarray(msa_dim, dtype))
        w = jax.random.normal(wkey, (msa_dim, num_output), dtype) * scale
    b = jnp.zeros((num_output,), dtype)
    return w, b


if __name__ == "__main__":
    key = jax.random.PRNGKey(0)

    def run_case(n_seq, n_res, msa_dim, num_output, *, compute_dtype=None,
                 atol=1e-5, rtol=1e-5):
        case_key = jax.random.fold_in(key, n_seq * 1000 + n_res)
        xkey, pkey = jax.random.split(case_key)
        msa_act = jax.random.normal(xkey, (n_seq, n_res, msa_dim), jnp.float32)
        # Non-zero ('linear') initializer so the output is non-trivial; the
        # module's zero_init default would produce all-zero logits.
        weight, bias = init_masked_msa_head_params(
            pkey, msa_dim, num_output, zero_init=False)

        out = masked_msa_head_pallas(msa_act, weight, bias, tm=2048,
                                     compute_dtype=compute_dtype)
        logits = jax.block_until_ready(out["logits"])

        ref = msa_act @ weight + bias
        assert logits.shape == (n_seq, n_res, num_output)
        assert logits.dtype == jnp.float32
        assert jnp.allclose(logits, ref, atol=atol, rtol=rtol)

    # Small, evenly-divisible case (M = 128).
    run_case(8, 16, 32, 23)
    # Ragged case (M = 185, not a multiple of any large tile) -> padding path.
    run_case(5, 37, 32, 23)
    # bf16-input path (halved HBM read traffic); f32 accumulation + f32 logits.
    run_case(8, 16, 32, 23, compute_dtype=jnp.bfloat16, atol=5e-2, rtol=5e-2)

    print("KERNEL_OK")
</pallas_src>

<mosaic_0001>
module attributes {stable_mosaic.version = 11 : i64} {
  func.func @_linear_kernel(%arg0: i32, %arg1: memref<128x32xf32, #tpu.memory_space<vmem>>, %arg2: memref<32x23xf32, #tpu.memory_space<vmem>>, %arg3: memref<1x23xf32, #tpu.memory_space<vmem>>, %arg4: memref<128x23xf32, #tpu.memory_space<vmem>>) attributes {dimension_semantics = [#tpu.dimension_semantics<parallel>], iteration_bounds = array<i64: 1>, scalar_prefetch = 0 : i64, scratch_operands = 0 : i64, tpu.core_type = #tpu.core_type<tc>, window_params = [{transform_indices = @transform_0, window_bounds = array<i64: 128, 32>}, {pipeline_mode = #tpu.pipeline_mode<synchronous>, transform_indices = @transform_1, window_bounds = array<i64: 32, 23>}, {pipeline_mode = #tpu.pipeline_mode<synchronous>, transform_indices = @transform_2, window_bounds = array<i64: 1, 23>}, {transform_indices = @transform_3, window_bounds = array<i64: 128, 23>}]} {
    %c0 = arith.constant 0 : index
    %c0_0 = arith.constant 0 : index
    %0 = vector.load %arg1[%c0, %c0_0] : memref<128x32xf32, #tpu.memory_space<vmem>>, vector<128x32xf32>
    %c0_1 = arith.constant 0 : index
    %c0_2 = arith.constant 0 : index
    %1 = vector.load %arg2[%c0_1, %c0_2] : memref<32x23xf32, #tpu.memory_space<vmem>>, vector<32x23xf32>
    %cst = arith.constant dense<0.000000e+00> : vector<128x23xf32>
    %2 = tpu.matmul %0, %1, %cst {dimension_numbers = #tpu.dot_dimension_numbers<[1], [0], [0], [1], [0, 0, 1, 1], [], []>} : vector<128x32xf32>, vector<32x23xf32>, vector<128x23xf32> -> vector<128x23xf32>
    %c0_3 = arith.constant 0 : index
    %c0_4 = arith.constant 0 : index
    %3 = vector.load %arg3[%c0_3, %c0_4] : memref<1x23xf32, #tpu.memory_space<vmem>>, vector<1x23xf32>
    %4 = vector.broadcast %3 : vector<1x23xf32> to vector<128x23xf32>
    %5 = arith.addf %2, %4 : vector<128x23xf32>
    %c0_5 = arith.constant 0 : index
    %c0_6 = arith.constant 0 : index
    %6 = vector.load %arg4[%c0_5, %c0_6] : memref<128x23xf32, #tpu.memory_space<vmem>>, vector<128x23xf32>
    tpu.vector_store %arg4[%c0_5, %c0_6], %5 {strides = array<i32>} : memref<128x23xf32, #tpu.memory_space<vmem>>, vector<128x23xf32>,
    return
  }
  func.func @transform_0(%arg0: i32) -> (i32, i32) {
    %c0_i32 = arith.constant 0 : i32
    %c0_i32_0 = arith.constant 0 : i32
    return %arg0, %c0_i32 : i32, i32
  }
  func.func @transform_1(%arg0: i32) -> (i32, i32) {
    %c0_i32 = arith.constant 0 : i32
    %c0_i32_0 = arith.constant 0 : i32
    %c0_i32_1 = arith.constant 0 : i32
    return %c0_i32, %c0_i32_0 : i32, i32
  }
  func.func @transform_2(%arg0: i32) -> (i32, i32) {
    %c0_i32 = arith.constant 0 : i32
    %c0_i32_0 = arith.constant 0 : i32
    %c0_i32_1 = arith.constant 0 : i32
    return %c0_i32, %c0_i32_0 : i32, i32
  }
  func.func @transform_3(%arg0: i32) -> (i32, i32) {
    %c0_i32 = arith.constant 0 : i32
    %c0_i32_0 = arith.constant 0 : i32
    return %arg0, %c0_i32 : i32, i32
  }
}

</mosaic_0001>

<llo_original>
// kernel: masked_msa_head_pallas.1
$region0: #{masked_msa_head_pallas.1}
  #allocation0 [shape = 'u32[]', space=smem, size = 0x4, offset = 0x4, fixed_abs, tag = 'smem constant byte address 0x4 - core index']
  #allocation1 [shape = 'u32[144,128]{1,0:T(1,128)}', space=vmem, size = 0x12000, scoped, tag = 'internal scratch']
  %s0 = inlined_call_operand.hbm [shape: f32[128,32], index: 0, kind: input, shape index: {}]
  %s1 = inlined_call_operand.vmem [shape: f32[32,23], index: 1, kind: input, shape index: {}]
  %s2 = inlined_call_operand.vmem [shape: f32[1,23], index: 2, kind: input, shape index: {}]
  %s3 = inlined_call_operand.hbm [shape: f32[128,23], index: 3, kind: output, shape index: {}]
  %s4 = sld [smem:[#allocation0]]
  $region26: #{masked_msa_head_pallas.1} parent=0
    _
  %s6 = ssub.s32 1, %s4
  %s7 = scalar_select 0, %s6, %s4
  $region1: #{masked_msa_head_pallas.1} parent=0
    #allocation2 [shape = 'u8[65536]{0}', space=vmem, size = 0x10000, scoped, tag = 'input window, operand 0, single buffered']
    #allocation3 [shape = 's32[1]{0}', space=sflag, size = 0x4, scoped, tag = 'scoped memory for masked_msa_head_pallas.1']
    #allocation4 [shape = 's32[1]{0}', space=sflag, size = 0x4, scoped, tag = 'scoped memory for masked_msa_head_pallas.1']
    #allocation5 [shape = 'u8[65536]{0}', space=vmem, size = 0x10000, scoped, tag = 'output window, operand 0, single buffered']
    %8 = vsyncpa [#allocation3], 0
    %9 = vsyncpa [#allocation4], 0
    // Predicated region
    $region2: #{masked_msa_head_pallas.1} parent=1 // pred_check
      _
    $region3: #{masked_msa_head_pallas.1} parent=1 // pred_check_branch
      %11 = sbr.rel (0) target = $region5
    $region4: #{masked_msa_head_pallas.1} parent=1 // pred_region
      %s13 = ssub.s32 2048, 2048
      %14 = vsyncadd [#allocation3], %s13
      %s15 = sshll.u32 [#allocation2], 4
      %s16 = int_to_ptr.vmem [resolvable:$true] %s15
      %21 = dma.hbm_to_vmem [thread:$0]  %s0, 2048, %s16, [#allocation3], 128, 128, 8
    $region5: #{masked_msa_head_pallas.1} parent=1 // pred_fallthru
      _
    // Predicated region
    $region6: #{masked_msa_head_pallas.1} parent=1 // pred_check
      _
    $region7: #{masked_msa_head_pallas.1} parent=1 // pred_check_branch
      %23 = sbr.rel (0) target = $region9
    $region8: #{masked_msa_head_pallas.1} parent=1 // pred_region
      _
    $region9: #{masked_msa_head_pallas.1} parent=1 // pred_fallthru
      _
    // Predicated region
    $region10: #{masked_msa_head_pallas.1} parent=1 // pred_check
      _
    $region11: #{masked_msa_head_pallas.1} parent=1 // pred_check_branch
      %25 = sbr.rel (0) target = $region13
    $region12: #{masked_msa_head_pallas.1} parent=1 // pred_region
      _
    $region13: #{masked_msa_head_pallas.1} parent=1 // pred_fallthru
      _
    // Predicated region
    $region14: #{masked_msa_head_pallas.1} parent=1 // pred_check
      _
    $region15: #{masked_msa_head_pallas.1} parent=1 // pred_check_branch
      %27 = sbr.rel (0) target = $region17
    $region16: #{masked_msa_head_pallas.1} parent=1 // pred_region
      %28 = dma.done [#allocation3], 2048
    $region17: #{masked_msa_head_pallas.1} parent=1 // pred_fallthru
      _
    %v29 = vld [vmem:[#allocation2] sm:$0xff]
    %v30 = vld [vmem:[#allocation2 + $0x8] sm:$0xff]
    %v31 = vld [vmem:[#allocation2 + $0x10] sm:$0xff]
    %v32 = vld [vmem:[#allocation2 + $0x18] sm:$0xff]
    %v33 = vld [vmem:[#allocation2 + $0x20] sm:$0xff]
    %v34 = vld [vmem:[#allocation2 + $0x28] sm:$0xff]
    %v35 = vld [vmem:[#allocation2 + $0x30] sm:$0xff]
    %v36 = vld [vmem:[#allocation2 + $0x38] sm:$0xff]
    %v37 = vld [vmem:[#allocation2 + $0x40] sm:$0xff]
    %v38 = vld [vmem:[#allocation2 + $0x48] sm:$0xff]
    %v39 = vld [vmem:[#allocation2 + $0x50] sm:$0xff]
    %v40 = vld [vmem:[#allocation2 + $0x58] sm:$0xff]
    %v41 = vld [vmem:[#allocation2 + $0x60] sm:$0xff]
    %v42 = vld [vmem:[#allocation2 + $0x68] sm:$0xff]
    %v43 = vld [vmem:[#allocation2 + $0x70] sm:$0xff]
    %v44 = vld [vmem:[#allocation2 + $0x78] sm:$0xff]
    %v45 = vld [vmem:[%s1] sm:$0xff]
    %v46 = vld [vmem:[%s1 + $0x8] sm:$0xff]
    %v47 = vld [vmem:[%s1 + $0x10] sm:$0xff]
    %v48 = vld [vmem:[%s1 + $0x18] sm:$0xff]
    %v49 = vld [vmem:[%s2] sm:$0x1]
    %v51 = vlaneseq
    %v52 = vshrl.u32 %v51, 7
    %v53 = vsub.s32 0, %v52
    %v54 = vrot.slane %v49, %v53
    %vm56 = vcmask 261120
    %v58 = vsel %vm56, %v29, 0
    %v61 = vsel %vm56, %v30, 0
    %v64 = vsel %vm56, %v31, 0
    %v67 = vsel %vm56, %v32, 0
    %v70 = vsel %vm56, %v33, 0
    %v73 = vsel %vm56, %v34, 0
    %v76 = vsel %vm56, %v35, 0
    %v79 = vsel %vm56, %v36, 0
    %v82 = vsel %vm56, %v37, 0
    %v85 = vsel %vm56, %v38, 0
    %v88 = vsel %vm56, %v39, 0
    %v91 = vsel %vm56, %v40, 0
    %v94 = vsel %vm56, %v41, 0
    %v97 = vsel %vm56, %v42, 0
    %v100 = vsel %vm56, %v43, 0
    %v103 = vsel %vm56, %v44, 0
    %105 = vmatprep.subr.mxu0 0.0
    %106 = vmatpush1.msra.mxu0 %v45
    %107 = vmatprep.subr.mxu0 0.0
    %108 = vmatpush1.msra.mxu0 %v46
    %109 = vmatprep.subr.mxu0 0.0
    %110 = vmatpush1.msra.mxu0 %v47
    %111 = vmatprep.subr.mxu0 0.0
    %112 = vmatpush1.msra.mxu0 %v48
    %113 = vmatprep.subr.mxu0 0.0
    %114 = vmatpush1.msra.mxu0 0.0
    %115 = vmatprep.subr.mxu0 0.0
    %116 = vmatpush1.msra.mxu0 0.0
    %117 = vmatprep.subr.mxu0 0.0
    %118 = vmatpush1.msra.mxu0 0.0
    %119 = vmatprep.subr.mxu0 0.0
    %120 = vmatpush1.msra.mxu0 0.0
    %121 = vmatprep.subr.mxu0 0.0
    %122 = vmatpush1.msra.mxu0 0.0
    %123 = vmatprep.subr.mxu0 0.0
    %124 = vmatpush1.msra.mxu0 0.0
    %125 = vmatprep.subr.mxu0 0.0
    %126 = vmatpush1.msra.mxu0 0.0
    %127 = vmatprep.subr.mxu0 0.0
    %128 = vmatpush1.msra.mxu0 0.0
    %129 = vmatprep.subr.mxu0 0.0
    %130 = vmatpush1.msra.mxu0 0.0
    %131 = vmatprep.subr.mxu0 0.0
    %132 = vmatpush1.msra.mxu0 0.0
    %133 = vmatprep.subr.mxu0 0.0
    %134 = vmatpush1.msra.mxu0 0.0
    %135 = vmatprep.subr.mxu0 0.0
    %136 = vmatpush1.msra.mxu0 0.0
    %137 = vmatprep.subr.mxu0 0.0
    %138 = vmatpush1.msra.mxu0 0.0
    %139 = vmatprep.subr.mxu0 0.0
    %140 = vmatpush1.msra.mxu0 0.0
    %141 = vmatprep.subr.mxu0 0.0
    %142 = vmatpush1.msra.mxu0 0.0
    %143 = vmatprep.subr.mxu0 0.0
    %144 = vmatpush1.msra.mxu0 0.0
    %145 = vmatprep.subr.mxu0 0.0
    %146 = vmatpush1.msra.mxu0 0.0
    %147 = vmatprep.subr.mxu0 0.0
    %148 = vmatpush1.msra.mxu0 0.0
    %149 = vmatprep.subr.mxu0 0.0
    %150 = vmatpush1.msra.mxu0 0.0
    %151 = vmatprep.subr.mxu0 0.0
    %152 = vmatpush1.msra.mxu0 0.0
    %153 = vmatprep.subr.mxu0 0.0
    %154 = vmatpush1.msra.mxu0 0.0
    %155 = vmatprep.subr.mxu0 0.0
    %156 = vmatpush1.msra.mxu0 0.0
    %157 = vmatprep.subr.mxu0 0.0
    %158 = vmatpush1.msra.mxu0 0.0
    %159 = vmatprep.subr.mxu0 0.0
    %160 = vmatpush1.msra.mxu0 0.0
    %161 = vmatprep.subr.mxu0 0.0
    %162 = vmatpush1.msra.mxu0 0.0
    %163 = vmatprep.subr.mxu0 0.0
    %164 = vmatpush1.msra.mxu0 0.0
    %165 = vmatprep.subr.mxu0 0.0
    %166 = vmatpush1.msra.mxu0 0.0
    %167 = vmatprep.subr.mxu0 0.0
    %168 = vmatpush1.msra.mxu0 0.0
    %169 = vmatprep.mubr.f32.mxu0 0.0
    %170 = vmatmul.mubr.f32.gmra.mrb[0].mxu0 %v58
    %v171 = vpop.f32.mrb[0].mxu0
    %v172 = vadd.f32 %v54, %v171
    %v173 = vpop.f32.mrb[0].mxu0
    %174 = vmatprep.mubr.f32.mxu0 0.0
    %175 = vmatmul.mubr.f32.gmra.mrb[0].mxu0 %v61
    %v176 = vpop.f32.mrb[0].mxu0
    %v177 = vadd.f32 %v54, %v176
    %v178 = vpop.f32.mrb[0].mxu0
    %179 = vmatprep.mubr.f32.mxu0 0.0
    %180 = vmatmul.mubr.f32.gmra.mrb[0].mxu0 %v64
    %v181 = vpop.f32.mrb[0].mxu0
    %v182 = vadd.f32 %v54, %v181
    %v183 = vpop.f32.mrb[0].mxu0
    %184 = vmatprep.mubr.f32.mxu0 0.0
    %185 = vmatmul.mubr.f32.gmra.mrb[0].mxu0 %v67
    %v186 = vpop.f32.mrb[0].mxu0
    %v187 = vadd.f32 %v54, %v186
    %v188 = vpop.f32.mrb[0].mxu0
    %189 = vmatprep.mubr.f32.mxu0 0.0
    %190 = vmatmul.mubr.f32.gmra.mrb[0].mxu0 %v70
    %v191 = vpop.f32.mrb[0].mxu0
    %v192 = vadd.f32 %v54, %v191
    %v193 = vpop.f32.mrb[0].mxu0
    %194 = vmatprep.mubr.f32.mxu0 0.0
    %195 = vmatmul.mubr.f32.gmra.mrb[0].mxu0 %v73
    %v196 = vpop.f32.mrb[0].mxu0
    %v197 = vadd.f32 %v54, %v196
    %v198 = vpop.f32.mrb[0].mxu0
    %199 = vmatprep.mubr.f32.mxu0 0.0
    %200 = vmatmul.mubr.f32.gmra.mrb[0].mxu0 %v76
    %v201 = vpop.f32.mrb[0].mxu0
    %v202 = vadd.f32 %v54, %v201
    %v203 = vpop.f32.mrb[0].mxu0
    %204 = vmatprep.mubr.f32.mxu0 0.0
    %205 = vmatmul.mubr.f32.gmra.mrb[0].mxu0 %v79
    %v206 = vpop.f32.mrb[0].mxu0
    %v207 = vadd.f32 %v54, %v206
    %v208 = vpop.f32.mrb[0].mxu0
    %209 = vmatprep.mubr.f32.mxu0 0.0
    %210 = vmatmul.mubr.f32.gmra.mrb[0].mxu0 %v82
    %v211 = vpop.f32.mrb[0].mxu0
    %v212 = vadd.f32 %v54, %v211
    %v213 = vpop.f32.mrb[0].mxu0
    %214 = vmatprep.mubr.f32.mxu0 0.0
    %215 = vmatmul.mubr.f32.gmra.mrb[0].mxu0 %v85
    %v216 = vpop.f32.mrb[0].mxu0
    %v217 = vadd.f32 %v54, %v216
    %v218 = vpop.f32.mrb[0].mxu0
    %219 = vmatprep.mubr.f32.mxu0 0.0
    %220 = vmatmul.mubr.f32.gmra.mrb[0].mxu0 %v88
    %v221 = vpop.f32.mrb[0].mxu0
    %v222 = vadd.f32 %v54, %v221
    %v223 = vpop.f32.mrb[0].mxu0
    %224 = vmatprep.mubr.f32.mxu0 0.0
    %225 = vmatmul.mubr.f32.gmra.mrb[0].mxu0 %v91
    %v226 = vpop.f32.mrb[0].mxu0
    %v227 = vadd.f32 %v54, %v226
    %v228 = vpop.f32.mrb[0].mxu0
    %229 = vmatprep.mubr.f32.mxu0 0.0
    %230 = vmatmul.mubr.f32.gmra.mrb[0].mxu0 %v94
    %v231 = vpop.f32.mrb[0].mxu0
    %v232 = vadd.f32 %v54, %v231
    %v233 = vpop.f32.mrb[0].mxu0
    %234 = vmatprep.mubr.f32.mxu0 0.0
    %235 = vmatmul.mubr.f32.gmra.mrb[0].mxu0 %v97
    %v236 = vpop.f32.mrb[0].mxu0
    %v237 = vadd.f32 %v54, %v236
    %v238 = vpop.f32.mrb[0].mxu0
    %239 = vmatprep.mubr.f32.mxu0 0.0
    %240 = vmatmul.mubr.f32.gmra.mrb[0].mxu0 %v100
    %v241 = vpop.f32.mrb[0].mxu0
    %v242 = vadd.f32 %v54, %v241
    %v243 = vpop.f32.mrb[0].mxu0
    %244 = vmatprep.mubr.f32.mxu0 0.0
    %245 = vmatmul.mubr.f32.gmra.mrb[0].mxu0 %v103
    %v246 = vpop.f32.mrb[0].mxu0
    %v247 = vadd.f32 %v54, %v246
    %v248 = vpop.f32.mrb[0].mxu0
    %249 = vdwg.mxu0
    %vm250 = vcmask 187392
    %251 = vst.msk [vmem:[#allocation5] sm:$0xff] %vm250, %v172
    %252 = vst.msk [vmem:[#allocation5 + $0x8] sm:$0xff] %vm250, %v177
    %253 = vst.msk [vmem:[#allocation5 + $0x10] sm:$0xff] %vm250, %v182
    %254 = vst.msk [vmem:[#allocation5 + $0x18] sm:$0xff] %vm250, %v187
    %255 = vst.msk [vmem:[#allocation5 + $0x20] sm:$0xff] %vm250, %v192
    %256 = vst.msk [vmem:[#allocation5 + $0x28] sm:$0xff] %vm250, %v197
    %257 = vst.msk [vmem:[#allocation5 + $0x30] sm:$0xff] %vm250, %v202
    %258 = vst.msk [vmem:[#allocation5 + $0x38] sm:$0xff] %vm250, %v207
    %259 = vst.msk [vmem:[#allocation5 + $0x40] sm:$0xff] %vm250, %v212
    %260 = vst.msk [vmem:[#allocation5 + $0x48] sm:$0xff] %vm250, %v217
    %261 = vst.msk [vmem:[#allocation5 + $0x50] sm:$0xff] %vm250, %v222
    %262 = vst.msk [vmem:[#allocation5 + $0x58] sm:$0xff] %vm250, %v227
    %263 = vst.msk [vmem:[#allocation5 + $0x60] sm:$0xff] %vm250, %v232
    %264 = vst.msk [vmem:[#allocation5 + $0x68] sm:$0xff] %vm250, %v237
    %265 = vst.msk [vmem:[#allocation5 + $0x70] sm:$0xff] %vm250, %v242
    %266 = vst.msk [vmem:[#allocation5 + $0x78] sm:$0xff] %vm250, %v247
    // Predicated region
    $region18: #{masked_msa_head_pallas.1} parent=1 // pred_check
      _
    $region19: #{masked_msa_head_pallas.1} parent=1 // pred_check_branch
      %268 = sbr.rel (0) target = $region21
    $region20: #{masked_msa_head_pallas.1} parent=1 // pred_region
      %s270 = ssub.s32 2048, 2048
      %271 = vsyncadd [#allocation4], %s270
      %s272 = sshll.u32 [#allocation5], 4
      %s273 = int_to_ptr.vmem [resolvable:$true] %s272
      %278 = dma.vmem_to_hbm [thread:$0]  %s273, 2048, %s3, [#allocation4], 128, 128, 8
    $region21: #{masked_msa_head_pallas.1} parent=1 // pred_fallthru
      _
    // Predicated region
    $region22: #{masked_msa_head_pallas.1} parent=1 // pred_check
      _
    $region23: #{masked_msa_head_pallas.1} parent=1 // pred_check_branch
      %280 = sbr.rel (0) target = $region25
    $region24: #{masked_msa_head_pallas.1} parent=1 // pred_region
      %281 = dma.done [#allocation4], 2048
    $region25: #{masked_msa_head_pallas.1} parent=1 // pred_fallthru
      _
    %282 = vsyncpa [#allocation3], 1
    %283 = vsyncpa [#allocation4], 1

</llo_original>
